<compile_context>
chip_gen: v5e
topology: v5e:2x2
jax: 0.10.0
libtpu: 0.0.40
codegen_flags: <defaults>
</compile_context>

<pallas_src>
import functools

import jax
import jax.numpy as jnp
from jax import lax
from jax.experimental import pallas as pl
from jax.experimental.pallas import tpu as pltpu

_LANES = 128


def _mse_ce_scaled_kernel(preds_ref, target_ref, out_ref, acc_ref, *,
                          n_classes: int, inv_count: float,
                          valid_len: int, need_mask: bool, ts: int):
    """Grid = (N, num_spatial_tiles).

    preds_ref : (1, C, TS, 128)  VMEM   one sample, all classes, TS*128 positions
    target_ref: (1, TS, 128)     VMEM
    out_ref   : (1, 1)           SMEM   final mean loss
    acc_ref   : (TS, 128) f32    VMEM   running elementwise sum of squared errors
    """
    n = pl.program_id(0)
    s = pl.program_id(1)

    @pl.when((n == 0) & (s == 0))
    def _():
        acc_ref[...] = jnp.zeros_like(acc_ref)

    num_c = preds_ref.shape[1]

    # Unrolled argmax over the class axis (strict '>' keeps the first maximal
    # index, matching torch/jnp argmax).  Dense VPU compare/select per class.
    best_val = preds_ref[0, 0, :, :].astype(jnp.float32)
    best_idx = jnp.zeros(acc_ref.shape, jnp.float32)
    for c in range(1, num_c):
        v = preds_ref[0, c, :, :].astype(jnp.float32)
        gt = v > best_val
        best_val = jnp.where(gt, v, best_val)
        best_idx = jnp.where(gt, jnp.float32(c), best_idx)

    pred_scaled = (best_idx + 0.5) * (100.0 / float(n_classes))
    d = pred_scaled - target_ref[0].astype(jnp.float32)
    d2 = d * d

    if need_mask:
        row = lax.broadcasted_iota(jnp.int32, acc_ref.shape, 0)
        lane = lax.broadcasted_iota(jnp.int32, acc_ref.shape, 1)
        flat = (s * ts + row) * _LANES + lane
        d2 = jnp.where(flat < valid_len, d2, 0.0)

    acc_ref[...] += d2

    @pl.when((n == pl.num_programs(0) - 1) & (s == pl.num_programs(1) - 1))
    def _():
        out_ref[0, 0] = jnp.sum(acc_ref[...]) * inv_count


def mse_ce_scaled(preds_nchw: jax.Array, target_nhw: jax.Array,
                  n_classes: int, ts: int = 16) -> jax.Array:
    """preds_nchw: (N, C, H, W) float, target_nhw: (N, H, W) float."""
    N, C, H, W = preds_nchw.shape
    assert target_nhw.shape == (N, H, W)
    L = H * W

    # Free reshapes (trailing-dim splits only; no transpose / no extra HBM pass).
    Lp = ((L + _LANES - 1) // _LANES) * _LANES
    preds = preds_nchw.reshape(N, C, L)
    target = target_nhw.reshape(N, L)
    if Lp != L:
        # Rare path: pad the spatial axis up to a lane multiple (masked in-kernel).
        preds = jnp.pad(preds, ((0, 0), (0, 0), (0, Lp - L)))
        target = jnp.pad(target, ((0, 0), (0, Lp - L)))
    LS = Lp // _LANES
    x = preds.reshape(N, C, LS, _LANES)
    t = target.reshape(N, LS, _LANES)

    # Spatial tile = TS sublane-rows x 128 lanes.  Keep the double-buffered
    # preds block well inside the scoped-VMEM budget (v7x: 32 MiB scoped).
    bytes_per_row = C * _LANES * x.dtype.itemsize
    max_ts = max(8, ((8 << 20) // bytes_per_row) // 8 * 8)
    ts = max(8, (int(ts) // 8) * 8)
    ts = min(ts, max_ts)
    TS = LS if LS <= ts else ts            # full extent, or an 8-aligned tile

    grid = (N, pl.cdiv(LS, TS))
    need_mask = (Lp != L) or (LS % TS != 0)

    kernel = functools.partial(
        _mse_ce_scaled_kernel,
        n_classes=n_classes,
        inv_count=1.0 / float(N * L),
        valid_len=L,
        need_mask=need_mask,
        ts=TS)

    out = pl.pallas_call(
        kernel,
        out_shape=jax.ShapeDtypeStruct((1, 1), jnp.float32),
        grid_spec=pltpu.PrefetchScalarGridSpec(
            num_scalar_prefetch=0,
            grid=grid,
            in_specs=[
                pl.BlockSpec((1, C, TS, _LANES), lambda n, s: (n, 0, s, 0)),
                pl.BlockSpec((1, TS, _LANES), lambda n, s: (n, s, 0)),
            ],
            out_specs=pl.BlockSpec(memory_space=pltpu.SMEM),
            scratch_shapes=[pltpu.VMEM((TS, _LANES), jnp.float32)],
        ),
        compiler_params=pltpu.CompilerParams(
            dimension_semantics=("arbitrary", "arbitrary")),
    )(x, t)
    return out[0, 0]


if __name__ == "__main__":
    key = jax.random.PRNGKey(0)
    k1, k2 = jax.random.split(key)

    N, C, H, W = 2, 4, 16, 16          # n_classes = C = 4
    n_classes = C

    preds = jax.random.normal(k1, (N, C, H, W), dtype=jnp.float32)
    target = jax.random.uniform(k2, (N, H, W), dtype=jnp.float32) * 100.0

    loss = mse_ce_scaled(preds, target, n_classes)
    loss = jax.block_until_ready(loss)

    # Pure-JAX reference (same semantics as the PyTorch module).
    ref = jnp.mean(
        ((jnp.argmax(preds, axis=1).astype(jnp.float32) + 0.5) * 100.0 / n_classes
         - target) ** 2)
    assert jnp.allclose(loss, ref, rtol=1e-5, atol=1e-5), (loss, ref)

    print("KERNEL_OK")
</pallas_src>

<mosaic_0001>
module attributes {stable_mosaic.version = 11 : i64} {
  func.func @_mse_ce_scaled_kernel(%arg0: i32, %arg1: i32, %arg2: memref<1x4x2x128xf32, #tpu.memory_space<vmem>>, %arg3: memref<1x2x128xf32, #tpu.memory_space<vmem>>, %arg4: memref<1x1xf32, #tpu.memory_space<smem>>, %arg5: memref<2x128xf32, #tpu.memory_space<vmem>>) attributes {dimension_semantics = [#tpu.dimension_semantics<arbitrary>, #tpu.dimension_semantics<arbitrary>], iteration_bounds = array<i64: 2, 1>, scalar_prefetch = 0 : i64, scratch_operands = 1 : i64, tpu.core_type = #tpu.core_type<tc>, window_params = [{transform_indices = @transform_0, window_bounds = array<i64: 1, 4, 2, 128>}, {transform_indices = @transform_1, window_bounds = array<i64: 1, 2, 128>}, {transform_indices = @transform_2, window_bounds = array<i64: 1, 1>}]} {
    %c0_i32 = arith.constant 0 : i32
    %0 = arith.cmpi eq, %arg0, %c0_i32 : i32
    %c0_i32_0 = arith.constant 0 : i32
    %1 = arith.cmpi eq, %arg1, %c0_i32_0 : i32
    %2 = arith.andi %0, %1 : i1
    %3 = arith.extui %2 : i1 to i32
    %c0_i32_1 = arith.constant 0 : i32
    %4 = arith.cmpi ne, %3, %c0_i32_1 : i32
    scf.if %4 {
      %cst_28 = arith.constant 0.000000e+00 : f32
      %41 = vector.broadcast %cst_28 : f32 to vector<2x128xf32>
      %c0_29 = arith.constant 0 : index
      %c0_30 = arith.constant 0 : index
      %42 = vector.load %arg5[%c0_29, %c0_30] : memref<2x128xf32, #tpu.memory_space<vmem>>, vector<2x128xf32>
      tpu.vector_store %arg5[%c0_29, %c0_30], %41 {strides = array<i32>} : memref<2x128xf32, #tpu.memory_space<vmem>>, vector<2x128xf32>,
    } else {
    }
    %c0 = arith.constant 0 : index
    %c0_2 = arith.constant 0 : index
    %c0_3 = arith.constant 0 : index
    %c0_4 = arith.constant 0 : index
    %5 = vector.load %arg2[%c0, %c0_2, %c0_3, %c0_4] : memref<1x4x2x128xf32, #tpu.memory_space<vmem>>, vector<1x1x2x128xf32>
    %6 = vector.shape_cast %5 : vector<1x1x2x128xf32> to vector<2x128xf32>
    %cst = arith.constant 0.000000e+00 : f32
    %7 = vector.broadcast %cst : f32 to vector<2x128xf32>
    %c0_5 = arith.constant 0 : index
    %c1 = arith.constant 1 : index
    %c0_6 = arith.constant 0 : index
    %c0_7 = arith.constant 0 : index
    %8 = vector.load %arg2[%c0_5, %c1, %c0_6, %c0_7] : memref<1x4x2x128xf32, #tpu.memory_space<vmem>>, vector<1x1x2x128xf32>
    %9 = vector.shape_cast %8 : vector<1x1x2x128xf32> to vector<2x128xf32>
    %10 = arith.cmpf ogt, %9, %6 : vector<2x128xf32>
    %11 = arith.select %10, %9, %6 : vector<2x128xi1>, vector<2x128xf32>
    %cst_8 = arith.constant 1.000000e+00 : f32
    %12 = vector.broadcast %cst_8 : f32 to vector<2x128xf32>
    %13 = arith.select %10, %12, %7 : vector<2x128xi1>, vector<2x128xf32>
    %c0_9 = arith.constant 0 : index
    %c2 = arith.constant 2 : index
    %c0_10 = arith.constant 0 : index
    %c0_11 = arith.constant 0 : index
    %14 = vector.load %arg2[%c0_9, %c2, %c0_10, %c0_11] : memref<1x4x2x128xf32, #tpu.memory_space<vmem>>, vector<1x1x2x128xf32>
    %15 = vector.shape_cast %14 : vector<1x1x2x128xf32> to vector<2x128xf32>
    %16 = arith.cmpf ogt, %15, %11 : vector<2x128xf32>
    %17 = arith.select %16, %15, %11 : vector<2x128xi1>, vector<2x128xf32>
    %cst_12 = arith.constant 2.000000e+00 : f32
    %18 = vector.broadcast %cst_12 : f32 to vector<2x128xf32>
    %19 = arith.select %16, %18, %13 : vector<2x128xi1>, vector<2x128xf32>
    %c0_13 = arith.constant 0 : index
    %c3 = arith.constant 3 : index
    %c0_14 = arith.constant 0 : index
    %c0_15 = arith.constant 0 : index
    %20 = vector.load %arg2[%c0_13, %c3, %c0_14, %c0_15] : memref<1x4x2x128xf32, #tpu.memory_space<vmem>>, vector<1x1x2x128xf32>
    %21 = vector.shape_cast %20 : vector<1x1x2x128xf32> to vector<2x128xf32>
    %22 = arith.cmpf ogt, %21, %17 : vector<2x128xf32>
    %cst_16 = arith.constant 3.000000e+00 : f32
    %23 = vector.broadcast %cst_16 : f32 to vector<2x128xf32>
    %24 = arith.select %22, %23, %19 : vector<2x128xi1>, vector<2x128xf32>
    %cst_17 = arith.constant 5.000000e-01 : f32
    %25 = vector.broadcast %cst_17 : f32 to vector<2x128xf32>
    %26 = arith.addf %24, %25 : vector<2x128xf32>
    %cst_18 = arith.constant 2.500000e+01 : f32
    %27 = vector.broadcast %cst_18 : f32 to vector<2x128xf32>
    %28 = arith.mulf %26, %27 : vector<2x128xf32>
    %c0_19 = arith.constant 0 : index
    %c0_20 = arith.constant 0 : index
    %c0_21 = arith.constant 0 : index
    %29 = vector.load %arg3[%c0_19, %c0_20, %c0_21] : memref<1x2x128xf32, #tpu.memory_space<vmem>>, vector<1x2x128xf32>
    %30 = vector.shape_cast %29 : vector<1x2x128xf32> to vector<2x128xf32>
    %31 = arith.subf %28, %30 : vector<2x128xf32>
    %32 = arith.mulf %31, %31 : vector<2x128xf32>
    %c0_22 = arith.constant 0 : index
    %c0_23 = arith.constant 0 : index
    %33 = vector.load %arg5[%c0_22, %c0_23] : memref<2x128xf32, #tpu.memory_space<vmem>>, vector<2x128xf32>
    %34 = arith.addf %33, %32 : vector<2x128xf32>
    %c0_24 = arith.constant 0 : index
    %c0_25 = arith.constant 0 : index
    %35 = vector.load %arg5[%c0_24, %c0_25] : memref<2x128xf32, #tpu.memory_space<vmem>>, vector<2x128xf32>
    tpu.vector_store %arg5[%c0_24, %c0_25], %34 {strides = array<i32>} : memref<2x128xf32, #tpu.memory_space<vmem>>, vector<2x128xf32>,
    %c1_i32 = arith.constant 1 : i32
    %36 = arith.cmpi eq, %arg0, %c1_i32 : i32
    %c0_i32_26 = arith.constant 0 : i32
    %37 = arith.cmpi eq, %arg1, %c0_i32_26 : i32
    %38 = arith.andi %36, %37 : i1
    %39 = arith.extui %38 : i1 to i32
    %c0_i32_27 = arith.constant 0 : i32
    %40 = arith.cmpi ne, %39, %c0_i32_27 : i32
    scf.if %40 {
      %c0_28 = arith.constant 0 : index
      %c0_29 = arith.constant 0 : index
      %41 = vector.load %arg5[%c0_28, %c0_29] : memref<2x128xf32, #tpu.memory_space<vmem>>, vector<2x128xf32>
      %42 = vector.shape_cast %41 : vector<2x128xf32> to vector<1x2x128xf32>
      %cst_30 = arith.constant dense<0.000000e+00> : vector<1xf32>
      %43 = vector.multi_reduction <add>, %42, %cst_30 [1, 2] : vector<1x2x128xf32> to vector<1xf32>
      %44 = vector.shape_cast %43 : vector<1xf32> to vector<1x1x1xf32>
      %45 = vector.extract %44[0, 0, 0] : f32 from vector<1x1x1xf32>
      %cst_31 = arith.constant 0.001953125 : f32
      %46 = arith.mulf %45, %cst_31 : f32
      %c0_32 = arith.constant 0 : index
      %c0_33 = arith.constant 0 : index
      %47 = memref.load %arg4[%c0_32, %c0_33] : memref<1x1xf32, #tpu.memory_space<smem>>
      memref.store %46, %arg4[%c0_32, %c0_33] : memref<1x1xf32, #tpu.memory_space<smem>>
    } else {
    }
    return
  }
  func.func @transform_0(%arg0: i32, %arg1: i32) -> (i32, i32, i32, i32) {
    %c0_i32 = arith.constant 0 : i32
    %c0_i32_0 = arith.constant 0 : i32
    %c0_i32_1 = arith.constant 0 : i32
    return %arg0, %c0_i32, %arg1, %c0_i32_0 : i32, i32, i32, i32
  }
  func.func @transform_1(%arg0: i32, %arg1: i32) -> (i32, i32, i32) {
    %c0_i32 = arith.constant 0 : i32
    %c0_i32_0 = arith.constant 0 : i32
    return %arg0, %arg1, %c0_i32 : i32, i32, i32
  }
  func.func @transform_2(%arg0: i32, %arg1: i32) -> (i32, i32) {
    %c0_i32 = arith.constant 0 : i32
    %c0_i32_0 = arith.constant 0 : i32
    %c0_i32_1 = arith.constant 0 : i32
    return %c0_i32, %c0_i32_0 : i32, i32
  }
}

</mosaic_0001>

<llo_original>
// kernel: tpu_custom_call.1
$region0: #{tpu_custom_call.1}
  #allocation0 [shape = 'u32[]', space=smem, size = 0x4, offset = 0x4, fixed_abs, tag = 'smem constant byte address 0x4 - core index']
  #allocation1 [shape = 'u32[72,128]{1,0:T(1,128)}', space=vmem, size = 0x9000, scoped, tag = 'internal scratch']
  #allocation2 [shape = 'f32[2,128]{1,0:T(2,128)}', space=vmem, size = 0x400, scoped, tag = 'scratch operand']
  %s0 = inlined_call_operand.hbm [shape: f32[2,4,2,128], index: 0, kind: input, shape index: {}]
  %s1 = inlined_call_operand.hbm [shape: f32[2,2,128], index: 1, kind: input, shape index: {}]
  %s2 = inlined_call_operand.hbm [shape: f32[1,1], index: 2, kind: output, shape index: {}]
  %s3 = sld [smem:[#allocation0]]
  $region57: #{tpu_custom_call.1} parent=0
    _
  %s5 = ssub.s32 1, %s3
  %s6 = scalar_select 0, %s5, %s3
  $region1: #{tpu_custom_call.1} parent=0
    #allocation3 [shape = 'u8[8192]{0}', space=vmem, size = 0x2000, scoped, tag = 'input window, operand 0']
    #allocation4 [shape = 's32[2]{0}', space=sflag, size = 0x8, scoped, tag = 'scoped memory for tpu_custom_call.1']
    #allocation5 [shape = 's32[2]{0}', space=sflag, size = 0x8, scoped, tag = 'scoped memory for tpu_custom_call.1']
    #allocation6 [shape = 'u8[2048]{0}', space=vmem, size = 0x800, scoped, tag = 'input window, operand 1']
    #allocation7 [shape = 's32[2]{0}', space=sflag, size = 0x8, scoped, tag = 'scoped memory for tpu_custom_call.1']
    #allocation8 [shape = 'u8[512]{0}', space=smem, size = 0x200, scoped, tag = 'output window, operand 0, single buffered']
    %7 = vsyncpa [#allocation4], 0
    %s8 = scalar_lea.sflag [#allocation4], 1
    %9 = vsyncpa %s8, 0
    %10 = vsyncpa [#allocation7], 0
    %s11 = scalar_lea.sflag [#allocation7], 1
    %12 = vsyncpa %s11, 0
    %13 = vsyncpa [#allocation5], 0
    loop: start=0, step=1, limit=4
    $region2: #{tpu_custom_call.1} parent=1 // loop_pre_header
      _
    $region3: #{tpu_custom_call.1} parent=1 // loop_header
      %s15 = sphi 0, %s19
      %p16 = scmp.ge.s32.totalorder %s15, 4
      %s22 = sphi 0, %s34
      %s23 = sphi 0, %s30
      %s24 = sphi 0, %s22
      %s25 = sphi 0, %s23
      %s26 = sphi 0, %s24
      %s27 = sphi 0, %s25
      %s39 = sphi 0, %s41
      %s42 = sphi 0, %s39
      %s43 = sphi 0, %s42
      %s59 = sphi 0, %s43
      %s67 = sphi 0, %s69
      %s70 = sphi 0, %s67
      %s71 = sphi 0, %s70
      %s87 = sphi 0, %s71
      %s91 = sphi 0, %s91
      %s93 = sphi 0, %s91
      %s94 = sphi 0, %s93
      %s108 = sphi 0, %s94
    $region4: #{tpu_custom_call.1} parent=1 // loop_header_branch
      %18 = sbr.rel (%p16) target = $region8
    $region5: #{tpu_custom_call.1} parent=1 // loop_body
      %s20 = ssub.s32 %s15, 1
      %s21 = ssub.s32 %s15, 2
      %s28 = sadd.s32 1, %s23
      %p29 = scmp.ge.s32.totalorder %s28, 1
      %s30 = scalar_select %p29, 0, %s28
      %s31 = sadd.s32 1, %s22
      %s32 = scalar_select %p29, %s31, %s22
      %p33 = scmp.ge.s32.totalorder %s32, 2
      %s34 = scalar_select %p33, 0, %s32
      %s35 = ssub.s32 %s22, %s34
      %s36 = ssub.s32 %s23, %s30
      %s37 = sor.u32 %s35, %s36
      %p38 = scmp.eq.s32.totalorder %s37, 0
      %s40 = sadd.s32 %s39, 1
      %s41 = scalar_select %p38, %s39, %s40
      %p44 = pneg %p38
      %p45 = scmp.eq.s32.totalorder %s15, 1
      %p46 = por %p44, %p45
      %p47 = scmp.ne.s32.totalorder %s39, %s42
      %p48 = scmp.eq.s32.totalorder %s15, 0
      %p49 = por %p47, %p48
      %p50 = scmp.ne.s32.totalorder %s39, %s42
      %p51 = scmp.eq.s32.totalorder %s20, 1
      %p52 = por %p50, %p51
      %p53 = scmp.ne.s32.totalorder %s42, %s43
      %p54 = scmp.eq.s32.totalorder %s20, 0
      %p55 = por %p53, %p54
      %p56 = scmp.ne.s32.totalorder %s42, %s43
      %p57 = scmp.eq.s32.totalorder %s21, 1
      %p58 = por %p56, %p57
      %p60 = scmp.ne.s32.totalorder %s43, %s59
      %p61 = scmp.eq.s32.totalorder %s21, 0
      %p62 = por %p60, %p61
      %s63 = ssub.s32 %s22, %s34
      %s64 = ssub.s32 %s23, %s30
      %s65 = sor.u32 %s63, %s64
      %p66 = scmp.eq.s32.totalorder %s65, 0
      %s68 = sadd.s32 %s67, 1
      %s69 = scalar_select %p66, %s67, %s68
      %p72 = pneg %p66
      %p73 = scmp.eq.s32.totalorder %s15, 1
      %p74 = por %p72, %p73
      %p75 = scmp.ne.s32.totalorder %s67, %s70
      %p76 = scmp.eq.s32.totalorder %s15, 0
      %p77 = por %p75, %p76
      %p78 = scmp.ne.s32.totalorder %s67, %s70
      %p79 = scmp.eq.s32.totalorder %s20, 1
      %p80 = por %p78, %p79
      %p81 = scmp.ne.s32.totalorder %s70, %s71
      %p82 = scmp.eq.s32.totalorder %s20, 0
      %p83 = por %p81, %p82
      %p84 = scmp.ne.s32.totalorder %s70, %s71
      %p85 = scmp.eq.s32.totalorder %s21, 1
      %p86 = por %p84, %p85
      %p88 = scmp.ne.s32.totalorder %s71, %s87
      %p89 = scmp.eq.s32.totalorder %s21, 0
      %p90 = por %p88, %p89
      %s92 = sadd.s32 %s91, 1
      %p95 = scmp.eq.s32.totalorder %s15, 1
      %p96 = scmp.ne.s32.totalorder %s91, %s93
      %p97 = scmp.eq.s32.totalorder %s15, 0
      %p98 = por %p96, %p97
      %p99 = scmp.ne.s32.totalorder %s91, %s93
      %p100 = scmp.eq.s32.totalorder %s20, 1
      %p101 = por %p99, %p100
      %p102 = scmp.ne.s32.totalorder %s93, %s94
      %p103 = scmp.eq.s32.totalorder %s20, 0
      %p104 = por %p102, %p103
      %p105 = scmp.ne.s32.totalorder %s93, %s94
      %p106 = scmp.eq.s32.totalorder %s21, 1
      %p107 = por %p105, %p106
      %p109 = scmp.ne.s32.totalorder %s94, %s108
      %p110 = scmp.eq.s32.totalorder %s21, 0
      %p111 = por %p109, %p110
      %p112 = scmp.le.s32.totalorder 1, %s15
      %p113 = scmp.lt.s32.totalorder %s15, 3
      %p114 = pnand %p112, %p113
      %p115 = pneg %p114
      // Predicated region
      $region9: #{tpu_custom_call.1} parent=5 // pred_check
        _
      $region10: #{tpu_custom_call.1} parent=5 // pred_check_branch
        %117 = sbr.rel (%p114) target = $region12
      $region11: #{tpu_custom_call.1} parent=5 // pred_region
        %s118 = ssub.s32 %s15, 1
      $region12: #{tpu_custom_call.1} parent=5 // pred_fallthru
        _
      %p119 = scmp.lt.s32.totalorder %s15, 2
      // Predicated region
      $region13: #{tpu_custom_call.1} parent=5 // pred_check
        %p120 = pneg %p119
      $region14: #{tpu_custom_call.1} parent=5 // pred_check_branch
        %122 = sbr.rel (%p120) target = $region16
      $region15: #{tpu_custom_call.1} parent=5 // pred_region
        // Predicated region
        $region17: #{tpu_custom_call.1} parent=15 // pred_check
          %p123 = pneg %p49
        $region18: #{tpu_custom_call.1} parent=15 // pred_check_branch
          %125 = sbr.rel (%p123) target = $region20
        $region19: #{tpu_custom_call.1} parent=15 // pred_region
          %s126 = sand.u32 %s39, 1
          %s127 = scalar_lea.sflag [#allocation4], %s126
          %s128 = sand.u32 %s39, 1
          %s129 = smul.addr %s128, 8
          %s130 = scalar_lea.vmem [#allocation3], %s129
          %132 = vsyncadd %s127, 0
          %s133 = smul.addr %s22, 4
          %s134 = sadd.s32 %s23, %s133
          %s135 = smul.addr %s134, 2
          %s136 = scalar_lea.hbm %s0, %s135
          %s137 = sshll.u32 %s136, 4
          %s138 = int_to_ptr.hbm [resolvable:$true] %s137
          %s139 = sshll.u32 %s130, 4
          %s140 = int_to_ptr.vmem [resolvable:$true] %s139
          %145 = dma.hbm_to_vmem [thread:$0]  %s138, 128, %s140, %s127, 32, 32, 2
        $region20: #{tpu_custom_call.1} parent=15 // pred_fallthru
          _
        // Predicated region
        $region21: #{tpu_custom_call.1} parent=15 // pred_check
          %p146 = pneg %p77
        $region22: #{tpu_custom_call.1} parent=15 // pred_check_branch
          %148 = sbr.rel (%p146) target = $region24
        $region23: #{tpu_custom_call.1} parent=15 // pred_region
          %s149 = sand.u32 %s67, 1
          %s150 = scalar_lea.sflag [#allocation7], %s149
          %s151 = sand.u32 %s67, 1
          %s152 = smul.addr %s151, 2
          %s153 = scalar_lea.vmem [#allocation6], %s152
          %155 = vsyncadd %s150, 0
          %s156 = sadd.s32 %s23, %s22
          %s157 = smul.addr %s156, 2
          %s158 = scalar_lea.hbm %s1, %s157
          %s160 = sshll.u32 %s158, 4
          %s161 = int_to_ptr.hbm [resolvable:$true] %s160
          %s162 = sshll.u32 %s153, 4
          %s163 = int_to_ptr.vmem [resolvable:$true] %s162
          %165 = dma.hbm_to_vmem [thread:$0]  %s161, 32, %s163, %s150
        $region24: #{tpu_custom_call.1} parent=15 // pred_fallthru
          _
      $region16: #{tpu_custom_call.1} parent=5 // pred_fallthru
        _
      %p166 = scmp.le.s32.totalorder 1, %s15
      %p167 = scmp.lt.s32.totalorder %s15, 3
      %p168 = pnand %p166, %p167
      %p169 = pneg %p168
      // Predicated region
      $region25: #{tpu_custom_call.1} parent=5 // pred_check
        _
      $region26: #{tpu_custom_call.1} parent=5 // pred_check_branch
        %171 = sbr.rel (%p168) target = $region28
      $region27: #{tpu_custom_call.1} parent=5 // pred_region
        %s172 = ssub.s32 %s15, 1
        %s173 = sand.u32 %s42, 1
        %s174 = scalar_lea.sflag [#allocation4], %s173
        %s175 = sand.u32 %s42, 1
        %s176 = smul.addr %s175, 8
        %s177 = scalar_lea.vmem [#allocation3], %s176
        // Predicated region
        $region29: #{tpu_custom_call.1} parent=27 // pred_check
          %p178 = pneg %p55
        $region30: #{tpu_custom_call.1} parent=27 // pred_check_branch
          %180 = sbr.rel (%p178) target = $region32
        $region31: #{tpu_custom_call.1} parent=27 // pred_region
          %182 = dma.done %s174, 128
        $region32: #{tpu_custom_call.1} parent=27 // pred_fallthru
          _
        %s183 = sand.u32 %s70, 1
        %s184 = scalar_lea.sflag [#allocation7], %s183
        %s185 = sand.u32 %s70, 1
        %s186 = smul.addr %s185, 2
        %s187 = scalar_lea.vmem [#allocation6], %s186
        // Predicated region
        $region33: #{tpu_custom_call.1} parent=27 // pred_check
          %p188 = pneg %p83
        $region34: #{tpu_custom_call.1} parent=27 // pred_check_branch
          %190 = sbr.rel (%p188) target = $region36
        $region35: #{tpu_custom_call.1} parent=27 // pred_region
          %192 = dma.done %s184, 32
        $region36: #{tpu_custom_call.1} parent=27 // pred_fallthru
          _
        %s193 = sand.u32 %s42, 1
        %s194 = scalar_lea.sflag [#allocation4], %s193
        %s195 = sand.u32 %s42, 1
        %s196 = smul.addr %s195, 8
        %s197 = scalar_lea.vmem [#allocation3], %s196
        %p198 = pneg %p55
        %p199 = pneg %p52
        %s200 = sand.u32 %s70, 1
        %s201 = scalar_lea.sflag [#allocation7], %s200
        %s202 = sand.u32 %s70, 1
        %s203 = smul.addr %s202, 2
        %s204 = scalar_lea.vmem [#allocation6], %s203
        %p205 = pneg %p83
        %p206 = pneg %p80
        %p207 = pneg %p104
        %p208 = pneg %p101
        %p209 = scmp.eq.s32.totalorder %s24, 0
        %p210 = scmp.eq.s32.totalorder %s25, 0
        %p211 = pnand %p209, %p210
        %p212 = pneg %p211
        // Predicated region
        $region37: #{tpu_custom_call.1} parent=27 // pred_check
          _
        $region38: #{tpu_custom_call.1} parent=27 // pred_check_branch
          %214 = sbr.rel (%p211) target = $region40
        $region39: #{tpu_custom_call.1} parent=27 // pred_region
          %215 = vst [vmem:[#allocation2] sm:$0x3] 0.0
        $region40: #{tpu_custom_call.1} parent=27 // pred_fallthru
          _
        %v216 = vld [vmem:[%s177] sm:$0x3]
        %s217 = scalar_lea.vmem %s177, 2 [#allocation3]
        %v218 = vld [vmem:[%s217] sm:$0x3]
        %vm219 = vcmp.gt.f32.partialorder %v218, %v216
        %v220 = vsel %vm219, %v218, %v216
        %v221 = vsel %vm219, 1.0, 0.0
        %s222 = scalar_lea.vmem %s177, 4 [#allocation3]
        %v223 = vld [vmem:[%s222] sm:$0x3]
        %vm224 = vcmp.gt.f32.partialorder %v223, %v220
        %v225 = vsel %vm224, %v223, %v220
        %v226 = vsel %vm224, 2.0, %v221
        %s227 = scalar_lea.vmem %s177, 6 [#allocation3]
        %v228 = vld [vmem:[%s227] sm:$0x3]
        %vm229 = vcmp.gt.f32.partialorder %v228, %v225
        %v230 = vsel %vm229, 3.0, %v226
        %v231 = vadd.f32 %v230, 0.5
        %v232 = vmul.f32 %v231, 25.0
        %v233 = vld [vmem:[%s187] sm:$0x3]
        %v234 = vsub.f32 %v232, %v233
        %v235 = vmul.f32 %v234, %v234
        %v236 = vld [vmem:[#allocation2] sm:$0x3]
        %v237 = vadd.f32 %v236, %v235
        %238 = vst [vmem:[#allocation2] sm:$0x3] %v237
        %p239 = scmp.eq.s32.totalorder %s24, 1
        %p240 = pnand %p239, %p210
        %p241 = pneg %p240
        // Predicated region
        $region41: #{tpu_custom_call.1} parent=27 // pred_check
          _
        $region42: #{tpu_custom_call.1} parent=27 // pred_check_branch
          %243 = sbr.rel (%p240) target = $region44
        $region43: #{tpu_custom_call.1} parent=27 // pred_region
          %v244 = vld [vmem:[#allocation2] sm:$0x3]
          %vm245 = vcmask 1041408
          %v246 = vsel %vm245, %v244, 0.0
          %247 = vadd.xlane.f32.xlu0 %v246
          %v248 = vpop.xlane.xlu0 %247
          %v249 = vrot.slane %v248, 4
          %v250 = vadd.f32 %v248, %v249
          %v251 = vrot.slane %v250, 2
          %v252 = vadd.f32 %v250, %v251
          %v253 = vrot.slane %v252, 1
          %v254 = vadd.f32 %v252, %v253
          %s255 = vtos %v254
          %s256 = smul.f32 %s255, 0.001953125
          %s257 = scalar_lea.smem [#allocation8], 0
          %258 = sst [smem:[%s257]] %s256
        $region44: #{tpu_custom_call.1} parent=27 // pred_fallthru
          _
        // Predicated region
        $region45: #{tpu_custom_call.1} parent=27 // pred_check
          %p259 = pneg %p101
        $region46: #{tpu_custom_call.1} parent=27 // pred_check_branch
          %261 = sbr.rel (%p259) target = $region48
        $region47: #{tpu_custom_call.1} parent=27 // pred_region
          %263 = vsyncadd [#allocation5], 0
          %s265 = sshll.u32 %s2, 4
          %s266 = int_to_ptr.hbm [resolvable:$true] %s265
          %268 = dma.smem_to_hbm [#allocation8], 16, %s266, [#allocation5]
        $region48: #{tpu_custom_call.1} parent=27 // pred_fallthru
          _
        // Predicated region
        $region49: #{tpu_custom_call.1} parent=27 // pred_check
          %p269 = pneg %p101
        $region50: #{tpu_custom_call.1} parent=27 // pred_check_branch
          %271 = sbr.rel (%p269) target = $region52
        $region51: #{tpu_custom_call.1} parent=27 // pred_region
          %273 = dma.done [#allocation5], 16
        $region52: #{tpu_custom_call.1} parent=27 // pred_fallthru
          _
        %274 = sfence
      $region28: #{tpu_custom_call.1} parent=5 // pred_fallthru
        _
      %p275 = scmp.le.s32.totalorder 2, %s15
      // Predicated region
      $region53: #{tpu_custom_call.1} parent=5 // pred_check
        %p276 = pneg %p275
      $region54: #{tpu_custom_call.1} parent=5 // pred_check_branch
        %278 = sbr.rel (%p276) target = $region56
      $region55: #{tpu_custom_call.1} parent=5 // pred_region
        %s279 = ssub.s32 %s15, 2
      $region56: #{tpu_custom_call.1} parent=5 // pred_fallthru
        _
    $region6: #{tpu_custom_call.1} parent=1 // loop_footer
      %s19 = sadd.s32 1, %s15
    $region7: #{tpu_custom_call.1} parent=1 // loop_footer_branch
      %14 = sbr.rel target = $region3
    $region8: #{tpu_custom_call.1} parent=1 // loop_exit
      _
    %280 = vsyncpa [#allocation4], 1
    %s281 = scalar_lea.sflag [#allocation4], 1
    %282 = vsyncpa %s281, 1
    %283 = vsyncpa [#allocation7], 1
    %s284 = scalar_lea.sflag [#allocation7], 1
    %285 = vsyncpa %s284, 1
    %286 = vsyncpa [#allocation5], 1
    %s287 = scalar_lea.sflag [#allocation5], 1
    %288 = vsyncpa %s287, 1

</llo_original>
